<compile_context>
chip_gen: v6e
topology: v6e:2x2x1
jax: 0.10.0
libtpu: 0.0.40
codegen_flags: <defaults>
</compile_context>

<pallas_src>
import jax
import jax.numpy as jnp
from jax.experimental import pallas as pl
from jax.experimental.pallas import tpu as pltpu


def make_linear_schedule(num_timesteps):
    # Always compute the schedule in float32: cumprod of ~T alphas in bf16
    # loses significant precision.
    betas = jnp.linspace(1e-4, 0.02, num_timesteps, dtype=jnp.float32)
    alphas = 1.0 - betas
    alpha_bar = jnp.cumprod(alphas)
    return jnp.sqrt(alpha_bar), jnp.sqrt(1.0 - alpha_bar)


def _ceil_to(x, m):
    return -(-x // m) * m


def _vmem_budget():
    """(per-array tile byte target, vmem_limit_bytes), generation-aware."""
    cap = None
    try:
        cap = int(getattr(pltpu.get_tpu_info(), "vmem_capacity_bytes", 0)) or None
    except Exception:
        cap = None
    if cap is not None and cap >= 96 * 1024 * 1024:
        # v5e / v6e: 128 MiB physical VMEM -> bigger tiles, raised scoped limit.
        return 6 * 1024 * 1024, 64 * 1024 * 1024
    # v7x (64 MiB VMEM) or unknown: keep total live buffers well under 48 MiB.
    return 4 * 1024 * 1024, 48 * 1024 * 1024


def _rows_kernel(a_ref, s_ref, x_ref, n_ref, o_ref):
    # a_ref/s_ref: (TR, 1) f32 per-row coefficients (broadcast over lanes).
    # x_ref/n_ref/o_ref: (TR, LANE) tiles.
    # TODO(synk): for bf16 inputs on v6e/v7x one could compute in bf16; f32
    # compute is kept so results match the f32 reference on all generations.
    a = a_ref[...]
    s = s_ref[...]
    x = x_ref[...].astype(jnp.float32)
    n = n_ref[...].astype(jnp.float32)
    o_ref[...] = (a * x + s * n).astype(o_ref.dtype)


def _batch_kernel(a_ref, s_ref, x_ref, n_ref, o_ref):
    # a_ref/s_ref: [B] f32 in SMEM (scalar prefetch); x/n/o: (1, TN) slab chunk.
    b = pl.program_id(0)
    a = a_ref[b]
    s = s_ref[b]
    x = x_ref[...].astype(jnp.float32)
    n = n_ref[...].astype(jnp.float32)
    o_ref[...] = (a * x + s * n).astype(o_ref.dtype)


def forward_model_apply(x_0, t, noise, num_timesteps, schedule="linear"):
    """q(x_t | x_0) sample. x_0, noise: [B, ...]; t: [B] int."""
    assert schedule == "linear"
    B = x_0.shape[0]
    N = 1
    for d in x_0.shape[1:]:
        N *= d
    itemsize = jnp.dtype(x_0.dtype).itemsize

    sqrt_ab, sqrt_1mab = make_linear_schedule(num_timesteps)
    # Clamp t: TPU has no runtime bounds check on SMEM / gather reads.
    t = jnp.clip(t.astype(jnp.int32), 0, num_timesteps - 1)
    a = sqrt_ab[t]        # [B] f32
    s = sqrt_1mab[t]      # [B] f32

    tile_bytes, vmem_limit = _vmem_budget()
    cost = pl.CostEstimate(flops=3 * B * N,
                           transcendentals=0,
                           bytes_accessed=3 * B * N * itemsize)

    lane = None
    for cand in (2048, 1024, 512, 256, 128):
        if N % cand == 0:
            lane = cand
            break

    if lane is not None:
        # --- fast path: batch flattened into rows, no padding copies -------
        sub = 8 * max(1, 4 // itemsize)       # 8 f32, 16 bf16, 32 int8
        rows_per_batch = N // lane
        total_rows = B * rows_per_batch

        x_2d = x_0.reshape(total_rows, lane)          # free reshape
        n_2d = noise.reshape(total_rows, lane)
        a_rows = jnp.repeat(a, rows_per_batch).reshape(total_rows, 1)
        s_rows = jnp.repeat(s, rows_per_batch).reshape(total_rows, 1)

        if total_rows <= sub:
            tr = total_rows                   # full-extent block (allowed)
        else:
            tr_cap = max(sub, (tile_bytes // (lane * itemsize)) // sub * sub)
            tr = min(tr_cap, _ceil_to(total_rows, sub))
            if tr >= total_rows:
                # split into >= 2 grid steps so both v7x TensorCores get work
                tr = _ceil_to(-(-total_rows // 2), sub)
        num_tiles = pl.cdiv(total_rows, tr)

        grid_spec = pltpu.PrefetchScalarGridSpec(
            num_scalar_prefetch=0,
            grid=(num_tiles,),
            in_specs=[
                pl.BlockSpec((tr, 1), lambda i: (i, 0)),
                pl.BlockSpec((tr, 1), lambda i: (i, 0)),
                pl.BlockSpec((tr, lane), lambda i: (i, 0)),
                pl.BlockSpec((tr, lane), lambda i: (i, 0)),
            ],
            out_specs=pl.BlockSpec((tr, lane), lambda i: (i, 0)),
        )

        x_t = pl.pallas_call(
            _rows_kernel,
            out_shape=jax.ShapeDtypeStruct((total_rows, lane), x_0.dtype),
            grid_spec=grid_spec,
            compiler_params=pltpu.CompilerParams(
                dimension_semantics=("parallel",),
                vmem_limit_bytes=vmem_limit),
            cost_estimate=cost,
        )(a_rows, s_rows, x_2d, n_2d)
        return x_t.reshape(x_0.shape)

    # --- ragged fallback (N % 128 != 0): exact per-batch slab chunks -------
    # No pad / de-pad copies; the last (partial) tile is handled by Pallas.
    tn = min(_ceil_to(N, 128), 128 * 512)
    n_col_tiles = pl.cdiv(N, tn)
    x_3d = x_0.reshape(B, 1, N)
    n_3d = noise.reshape(B, 1, N)
    blk = (pl.Squeezed(), 1, tn)              # kernel sees a (1, tn) tile

    grid_spec = pltpu.PrefetchScalarGridSpec(
        num_scalar_prefetch=2,
        grid=(B, n_col_tiles),
        in_specs=[
            pl.BlockSpec(blk, lambda b, c, a_r, s_r: (b, 0, c)),
            pl.BlockSpec(blk, lambda b, c, a_r, s_r: (b, 0, c)),
        ],
        out_specs=pl.BlockSpec(blk, lambda b, c, a_r, s_r: (b, 0, c)),
    )

    x_t = pl.pallas_call(
        _batch_kernel,
        out_shape=jax.ShapeDtypeStruct((B, 1, N), x_0.dtype),
        grid_spec=grid_spec,
        compiler_params=pltpu.CompilerParams(
            dimension_semantics=("parallel", "parallel"),
            vmem_limit_bytes=vmem_limit),
        cost_estimate=cost,
    )(a, s, x_3d, n_3d)
    return x_t.reshape(x_0.shape)


if __name__ == "__main__":
    num_timesteps = 100
    B, C, H, W = 2, 4, 16, 16

    key = jax.random.PRNGKey(0)
    kx, kn, kt = jax.random.split(key, 3)
    x_0 = jax.random.normal(kx, (B, C, H, W), dtype=jnp.float32)
    noise = jax.random.normal(kn, (B, C, H, W), dtype=jnp.float32)
    t = jax.random.randint(kt, (B,), 0, num_timesteps, dtype=jnp.int32)

    x_t = forward_model_apply(x_0, t, noise, num_timesteps, schedule="linear")
    jax.block_until_ready(x_t)

    # reference check in plain JAX (fast / 128-aligned path)
    sqrt_ab, sqrt_1mab = make_linear_schedule(num_timesteps)
    ref = sqrt_ab[t][:, None, None, None] * x_0 \
        + sqrt_1mab[t][:, None, None, None] * noise
    assert jnp.allclose(x_t, ref, atol=1e-6), "mismatch vs reference (aligned)"

    # non-128-aligned spatial size exercises the ragged fallback path (C*H*W=784)
    H2 = W2 = 14
    x_0b = jax.random.normal(kx, (B, C, H2, W2), dtype=jnp.float32)
    noiseb = jax.random.normal(kn, (B, C, H2, W2), dtype=jnp.float32)
    x_tb = forward_model_apply(x_0b, t, noiseb, num_timesteps)
    jax.block_until_ready(x_tb)
    refb = sqrt_ab[t][:, None, None, None] * x_0b \
        + sqrt_1mab[t][:, None, None, None] * noiseb
    assert jnp.allclose(x_tb, refb, atol=1e-6), "mismatch vs reference (ragged)"

    print("KERNEL_OK")
</pallas_src>

<mosaic_0001>
module attributes {stable_mosaic.version = 11 : i64} {
  func.func @_rows_kernel(%arg0: i32, %arg1: memref<2x1xf32, #tpu.memory_space<vmem>>, %arg2: memref<2x1xf32, #tpu.memory_space<vmem>>, %arg3: memref<2x1024xf32, #tpu.memory_space<vmem>>, %arg4: memref<2x1024xf32, #tpu.memory_space<vmem>>, %arg5: memref<2x1024xf32, #tpu.memory_space<vmem>>) attributes {dimension_semantics = [#tpu.dimension_semantics<parallel>], iteration_bounds = array<i64: 1>, scalar_prefetch = 0 : i64, scratch_operands = 0 : i64, tpu.core_type = #tpu.core_type<tc>, window_params = [{transform_indices = @transform_0, window_bounds = array<i64: 2, 1>}, {transform_indices = @transform_1, window_bounds = array<i64: 2, 1>}, {transform_indices = @transform_2, window_bounds = array<i64: 2, 1024>}, {transform_indices = @transform_3, window_bounds = array<i64: 2, 1024>}, {transform_indices = @transform_4, window_bounds = array<i64: 2, 1024>}]} {
    %c0 = arith.constant 0 : index
    %c0_0 = arith.constant 0 : index
    %0 = vector.load %arg1[%c0, %c0_0] : memref<2x1xf32, #tpu.memory_space<vmem>>, vector<2x1xf32>
    %c0_1 = arith.constant 0 : index
    %c0_2 = arith.constant 0 : index
    %1 = vector.load %arg2[%c0_1, %c0_2] : memref<2x1xf32, #tpu.memory_space<vmem>>, vector<2x1xf32>
    %c0_3 = arith.constant 0 : index
    %c0_4 = arith.constant 0 : index
    %2 = vector.load %arg3[%c0_3, %c0_4] : memref<2x1024xf32, #tpu.memory_space<vmem>>, vector<2x1024xf32>
    %c0_5 = arith.constant 0 : index
    %c0_6 = arith.constant 0 : index
    %3 = vector.load %arg4[%c0_5, %c0_6] : memref<2x1024xf32, #tpu.memory_space<vmem>>, vector<2x1024xf32>
    %4 = vector.broadcast %0 : vector<2x1xf32> to vector<2x1024xf32>
    %5 = arith.mulf %4, %2 : vector<2x1024xf32>
    %6 = vector.broadcast %1 : vector<2x1xf32> to vector<2x1024xf32>
    %7 = arith.mulf %6, %3 : vector<2x1024xf32>
    %8 = arith.addf %5, %7 : vector<2x1024xf32>
    %c0_7 = arith.constant 0 : index
    %c0_8 = arith.constant 0 : index
    %9 = vector.load %arg5[%c0_7, %c0_8] : memref<2x1024xf32, #tpu.memory_space<vmem>>, vector<2x1024xf32>
    tpu.vector_store %arg5[%c0_7, %c0_8], %8 {strides = array<i32>} : memref<2x1024xf32, #tpu.memory_space<vmem>>, vector<2x1024xf32>,
    return
  }
  func.func @transform_0(%arg0: i32) -> (i32, i32) {
    %c0_i32 = arith.constant 0 : i32
    %c0_i32_0 = arith.constant 0 : i32
    return %arg0, %c0_i32 : i32, i32
  }
  func.func @transform_1(%arg0: i32) -> (i32, i32) {
    %c0_i32 = arith.constant 0 : i32
    %c0_i32_0 = arith.constant 0 : i32
    return %arg0, %c0_i32 : i32, i32
  }
  func.func @transform_2(%arg0: i32) -> (i32, i32) {
    %c0_i32 = arith.constant 0 : i32
    %c0_i32_0 = arith.constant 0 : i32
    return %arg0, %c0_i32 : i32, i32
  }
  func.func @transform_3(%arg0: i32) -> (i32, i32) {
    %c0_i32 = arith.constant 0 : i32
    %c0_i32_0 = arith.constant 0 : i32
    return %arg0, %c0_i32 : i32, i32
  }
  func.func @transform_4(%arg0: i32) -> (i32, i32) {
    %c0_i32 = arith.constant 0 : i32
    %c0_i32_0 = arith.constant 0 : i32
    return %arg0, %c0_i32 : i32, i32
  }
}

</mosaic_0001>

<llo_original>
// kernel: tpu_custom_call.1
$region0: #{tpu_custom_call.1}
  #allocation0 [shape = 'u32[]', space=smem, size = 0x4, offset = 0x4, fixed_abs, tag = 'smem constant byte address 0x4 - core index']
  #allocation1 [shape = 'u32[144,128]{1,0:T(1,128)}', space=vmem, size = 0x12000, scoped, tag = 'internal scratch']
  %s0 = inlined_call_operand.vmem [shape: f32[2,1], index: 0, kind: input, shape index: {}]
  %s1 = inlined_call_operand.vmem [shape: f32[2,1], index: 1, kind: input, shape index: {}]
  %s2 = inlined_call_operand.hbm [shape: f32[2,1024], index: 2, kind: input, shape index: {}]
  %s3 = inlined_call_operand.hbm [shape: f32[2,1024], index: 3, kind: input, shape index: {}]
  %s4 = inlined_call_operand.hbm [shape: f32[2,1024], index: 4, kind: output, shape index: {}]
  %s5 = sld [smem:[#allocation0]]
  $region34: #{tpu_custom_call.1} parent=0
    _
  %s7 = ssub.s32 1, %s5
  %s8 = scalar_select 0, %s7, %s5
  $region1: #{tpu_custom_call.1} parent=0
    #allocation2 [shape = 'u8[8192]{0}', space=vmem, size = 0x2000, scoped, tag = 'input window, operand 2, single buffered']
    #allocation3 [shape = 's32[1]{0}', space=sflag, size = 0x4, scoped, tag = 'scoped memory for tpu_custom_call.1']
    #allocation4 [shape = 's32[1]{0}', space=sflag, size = 0x4, scoped, tag = 'scoped memory for tpu_custom_call.1']
    #allocation5 [shape = 'u8[8192]{0}', space=vmem, size = 0x2000, scoped, tag = 'input window, operand 3, single buffered']
    #allocation6 [shape = 's32[1]{0}', space=sflag, size = 0x4, scoped, tag = 'scoped memory for tpu_custom_call.1']
    #allocation7 [shape = 'u8[8192]{0}', space=vmem, size = 0x2000, scoped, tag = 'output window, operand 0, single buffered']
    %9 = vsyncpa [#allocation3], 0
    %10 = vsyncpa [#allocation6], 0
    %11 = vsyncpa [#allocation4], 0
    // Predicated region
    $region2: #{tpu_custom_call.1} parent=1 // pred_check
      _
    $region3: #{tpu_custom_call.1} parent=1 // pred_check_branch
      %13 = sbr.rel (0) target = $region5
    $region4: #{tpu_custom_call.1} parent=1 // pred_region
      _
    $region5: #{tpu_custom_call.1} parent=1 // pred_fallthru
      _
    // Predicated region
    $region6: #{tpu_custom_call.1} parent=1 // pred_check
      _
    $region7: #{tpu_custom_call.1} parent=1 // pred_check_branch
      %15 = sbr.rel (0) target = $region9
    $region8: #{tpu_custom_call.1} parent=1 // pred_region
      _
    $region9: #{tpu_custom_call.1} parent=1 // pred_fallthru
      _
    // Predicated region
    $region10: #{tpu_custom_call.1} parent=1 // pred_check
      _
    $region11: #{tpu_custom_call.1} parent=1 // pred_check_branch
      %17 = sbr.rel (0) target = $region13
    $region12: #{tpu_custom_call.1} parent=1 // pred_region
      %s19 = ssub.s32 256, 256
      %20 = vsyncadd [#allocation3], %s19
      %s22 = sshll.u32 [#allocation2], 4
      %s23 = int_to_ptr.vmem [resolvable:$true] %s22
      %25 = dma.hbm_to_vmem [thread:$0]  %s2, 256, %s23, [#allocation3]
    $region13: #{tpu_custom_call.1} parent=1 // pred_fallthru
      _
    // Predicated region
    $region14: #{tpu_custom_call.1} parent=1 // pred_check
      _
    $region15: #{tpu_custom_call.1} parent=1 // pred_check_branch
      %27 = sbr.rel (0) target = $region17
    $region16: #{tpu_custom_call.1} parent=1 // pred_region
      %s29 = ssub.s32 256, 256
      %30 = vsyncadd [#allocation6], %s29
      %s32 = sshll.u32 [#allocation5], 4
      %s33 = int_to_ptr.vmem [resolvable:$true] %s32
      %35 = dma.hbm_to_vmem [thread:$0]  %s3, 256, %s33, [#allocation6]
    $region17: #{tpu_custom_call.1} parent=1 // pred_fallthru
      _
    // Predicated region
    $region18: #{tpu_custom_call.1} parent=1 // pred_check
      _
    $region19: #{tpu_custom_call.1} parent=1 // pred_check_branch
      %37 = sbr.rel (0) target = $region21
    $region20: #{tpu_custom_call.1} parent=1 // pred_region
      %38 = dma.done [#allocation3], 256
    $region21: #{tpu_custom_call.1} parent=1 // pred_fallthru
      _
    // Predicated region
    $region22: #{tpu_custom_call.1} parent=1 // pred_check
      _
    $region23: #{tpu_custom_call.1} parent=1 // pred_check_branch
      %40 = sbr.rel (0) target = $region25
    $region24: #{tpu_custom_call.1} parent=1 // pred_region
      %41 = dma.done [#allocation6], 256
    $region25: #{tpu_custom_call.1} parent=1 // pred_fallthru
      _
    %v42 = vld [vmem:[%s0] sm:$0x3]
    %v43 = vld [vmem:[%s1] sm:$0x3]
    %v44 = vld [vmem:[#allocation2] sm:$0xff]
    %v45 = vld [vmem:[#allocation2 + $0x8] sm:$0xff]
    %v46 = vld [vmem:[#allocation5] sm:$0xff]
    %v47 = vld [vmem:[#allocation5 + $0x8] sm:$0xff]
    %49 = vset.pattern.permute.xlu0 0
    %50 = vperm.xlu0 %49, %v42
    %v51 = vpop.permute.xlu0 %50
    %v55 = vcombine.high %v44, %v44
    %v57 = vunpack.c.l.s4 1983009808
    %v58 = vunpack.c.0.s8 %v57
    %v59 = vlaneseq
    %v60 = vshrl.u32 %v59, 7
    %v61 = vsub.s32 %v58, %v60
    %v62 = vrot.slane %v44, %v61
    %v64 = vunpack.c.l.s4 1983009808
    %v65 = vunpack.c.0.s8 %v64
    %v66 = vlaneseq
    %v67 = vshrl.u32 %v66, 7
    %v68 = vsub.s32 %v65, %v67
    %v69 = vrot.slane %v55, %v68
    %v70 = vcombine.high %v62, %v62
    %v71 = vcombine.high %v69, %v69
    %v72 = vcombine.high %v45, %v45
    %v74 = vunpack.c.l.s4 1983009808
    %v75 = vunpack.c.0.s8 %v74
    %v76 = vlaneseq
    %v77 = vshrl.u32 %v76, 7
    %v78 = vsub.s32 %v75, %v77
    %v79 = vrot.slane %v45, %v78
    %v81 = vunpack.c.l.s4 1983009808
    %v82 = vunpack.c.0.s8 %v81
    %v83 = vlaneseq
    %v84 = vshrl.u32 %v83, 7
    %v85 = vsub.s32 %v82, %v84
    %v86 = vrot.slane %v72, %v85
    %v87 = vcombine.high %v79, %v79
    %v88 = vcombine.high %v86, %v86
    %v97 = vmul.f32 %v51, %v62
    %v98 = vmul.f32 %v51, %v70
    %v99 = vmul.f32 %v51, %v69
    %v100 = vmul.f32 %v51, %v71
    %v101 = vmul.f32 %v51, %v79
    %v102 = vmul.f32 %v51, %v87
    %v103 = vmul.f32 %v51, %v86
    %v104 = vmul.f32 %v51, %v88
    %106 = vset.pattern.permute.xlu0 0
    %107 = vperm.xlu0 %106, %v43
    %v108 = vpop.permute.xlu0 %107
    %v112 = vcombine.high %v46, %v46
    %v114 = vunpack.c.l.s4 1983009808
    %v115 = vunpack.c.0.s8 %v114
    %v116 = vlaneseq
    %v117 = vshrl.u32 %v116, 7
    %v118 = vsub.s32 %v115, %v117
    %v119 = vrot.slane %v46, %v118
    %v121 = vunpack.c.l.s4 1983009808
    %v122 = vunpack.c.0.s8 %v121
    %v123 = vlaneseq
    %v124 = vshrl.u32 %v123, 7
    %v125 = vsub.s32 %v122, %v124
    %v126 = vrot.slane %v112, %v125
    %v127 = vcombine.high %v119, %v119
    %v128 = vcombine.high %v126, %v126
    %v129 = vcombine.high %v47, %v47
    %v131 = vunpack.c.l.s4 1983009808
    %v132 = vunpack.c.0.s8 %v131
    %v133 = vlaneseq
    %v134 = vshrl.u32 %v133, 7
    %v135 = vsub.s32 %v132, %v134
    %v136 = vrot.slane %v47, %v135
    %v138 = vunpack.c.l.s4 1983009808
    %v139 = vunpack.c.0.s8 %v138
    %v140 = vlaneseq
    %v141 = vshrl.u32 %v140, 7
    %v142 = vsub.s32 %v139, %v141
    %v143 = vrot.slane %v129, %v142
    %v144 = vcombine.high %v136, %v136
    %v145 = vcombine.high %v143, %v143
    %v154 = vmul.f32 %v108, %v119
    %v155 = vmul.f32 %v108, %v127
    %v156 = vmul.f32 %v108, %v126
    %v157 = vmul.f32 %v108, %v128
    %v158 = vmul.f32 %v108, %v136
    %v159 = vmul.f32 %v108, %v144
    %v160 = vmul.f32 %v108, %v143
    %v161 = vmul.f32 %v108, %v145
    %v162 = vadd.f32 %v97, %v154
    %v163 = vadd.f32 %v98, %v155
    %v164 = vadd.f32 %v99, %v156
    %v165 = vadd.f32 %v100, %v157
    %v166 = vadd.f32 %v101, %v158
    %v167 = vadd.f32 %v102, %v159
    %v168 = vadd.f32 %v103, %v160
    %v169 = vadd.f32 %v104, %v161
    %v178 = vcombine.low %v162, %v163
    %v179 = vcombine.low %v164, %v165
    %v181 = vunpack.c.l.s4 1983009808
    %v182 = vunpack.c.0.s8 %v181
    %v183 = vlaneseq
    %v184 = vshrl.u32 %v183, 7
    %v185 = vsub.s32 %v182, %v184
    %v186 = vrot.slane %v178, %v185
    %v188 = vunpack.c.l.s4 1983009808
    %v189 = vunpack.c.0.s8 %v188
    %v190 = vlaneseq
    %v191 = vshrl.u32 %v190, 7
    %v192 = vsub.s32 %v189, %v191
    %v193 = vrot.slane %v179, %v192
    %v194 = vcombine.low %v186, %v193
    %v195 = vcombine.low %v166, %v167
    %v196 = vcombine.low %v168, %v169
    %v198 = vunpack.c.l.s4 1983009808
    %v199 = vunpack.c.0.s8 %v198
    %v200 = vlaneseq
    %v201 = vshrl.u32 %v200, 7
    %v202 = vsub.s32 %v199, %v201
    %v203 = vrot.slane %v195, %v202
    %v205 = vunpack.c.l.s4 1983009808
    %v206 = vunpack.c.0.s8 %v205
    %v207 = vlaneseq
    %v208 = vshrl.u32 %v207, 7
    %v209 = vsub.s32 %v206, %v208
    %v210 = vrot.slane %v196, %v209
    %v211 = vcombine.low %v203, %v210
    %214 = vst [vmem:[#allocation7] sm:$0xff] %v194
    %215 = vst [vmem:[#allocation7 + $0x8] sm:$0xff] %v211
    // Predicated region
    $region26: #{tpu_custom_call.1} parent=1 // pred_check
      _
    $region27: #{tpu_custom_call.1} parent=1 // pred_check_branch
      %217 = sbr.rel (0) target = $region29
    $region28: #{tpu_custom_call.1} parent=1 // pred_region
      %s219 = ssub.s32 256, 256
      %220 = vsyncadd [#allocation4], %s219
      %s222 = sshll.u32 [#allocation7], 4
      %s223 = int_to_ptr.vmem [resolvable:$true] %s222
      %225 = dma.vmem_to_hbm [thread:$0]  %s223, 256, %s4, [#allocation4]
    $region29: #{tpu_custom_call.1} parent=1 // pred_fallthru
      _
    // Predicated region
    $region30: #{tpu_custom_call.1} parent=1 // pred_check
      _
    $region31: #{tpu_custom_call.1} parent=1 // pred_check_branch
      %227 = sbr.rel (0) target = $region33
    $region32: #{tpu_custom_call.1} parent=1 // pred_region
      %228 = dma.done [#allocation4], 256
    $region33: #{tpu_custom_call.1} parent=1 // pred_fallthru
      _
    %229 = vsyncpa [#allocation3], 1
    %230 = vsyncpa [#allocation6], 1
    %231 = vsyncpa [#allocation4], 1

</llo_original>
